<compile_context>
chip_gen: v5e
topology: v5e:2x2
jax: 0.10.0
libtpu: 0.0.40
codegen_flags: <defaults>
</compile_context>

<pallas_src>
import jax
import jax.numpy as jnp
from jax.experimental import pallas as pl
from jax.experimental.pallas import tpu as pltpu

LANE = 128   # lane width / channel padding
EPS = 1e-5   # nn.BatchNorm2d default eps


# ------------------------------ Pallas kernels ------------------------------

def _matmul_stats_kernel(a_ref, b_ref, y_ref, s_ref):
    """im2col conv matmul (bf16 inputs, f32 accumulation) with the BN batch-stats
    reduction fused into the epilogue.

    s_ref is an (8, C) accumulator revisited across the row-tile grid axis:
      row 0 = per-channel sum, row 1 = per-channel sum-of-squares.
    """
    @pl.when(pl.program_id(0) == 0)
    def _():
        s_ref[...] = jnp.zeros_like(s_ref)

    y = jnp.dot(a_ref[...], b_ref[...], preferred_element_type=jnp.float32)
    y_ref[...] = y
    # Direct sub-row accumulation (no iota/where mask building).
    s_ref[0:1, :] += jnp.sum(y, axis=0, keepdims=True)
    s_ref[1:2, :] += jnp.sum(y * y, axis=0, keepdims=True)


def _bn_relu_kernel(y_ref, sb_ref, o_ref):
    # out = relu(y * scale + shift)          sb rows: [scale, shift, ...]
    o_ref[...] = jnp.maximum(y_ref[...] * sb_ref[0:1, :] + sb_ref[1:2, :], 0.0)


def _bn_add_bn_relu_kernel(y_ref, r_ref, sb_ref, o_ref):
    # out = relu( y*scale2 + shift2 + y_res*scale_r + shift_r )
    # sb rows: [scale2, shift2, scale_r, shift_r, ...]
    out = y_ref[...] * sb_ref[0:1, :] + sb_ref[1:2, :]
    out = out + (r_ref[...] * sb_ref[2:3, :] + sb_ref[3:4, :])
    o_ref[...] = jnp.maximum(out, 0.0)


# ------------------------------ pallas_call wrappers ------------------------------

def _row_tile(m_pad):
    """Largest elementwise row tile that divides m_pad (m_pad is a multiple of 128)."""
    for t in (2048, 1024, 512, 256, 128):
        if m_pad % t == 0:
            return t
    return 128


def pallas_conv_matmul_stats(a, b):
    """a: (m_pad, k_pad) bf16, b: (k_pad, c_pad) bf16
       -> y (m_pad, c_pad) f32,  stats (8, c_pad) f32 [row0 sum, row1 sumsq]."""
    m, k = a.shape
    _, n = b.shape
    tm = 256 if m % 256 == 0 else 128          # bigger MXU streams on v6e/v7x when possible
    return pl.pallas_call(
        _matmul_stats_kernel,
        out_shape=(jax.ShapeDtypeStruct((m, n), jnp.float32),
                   jax.ShapeDtypeStruct((8, n), jnp.float32)),
        grid_spec=pltpu.PrefetchScalarGridSpec(
            num_scalar_prefetch=0,
            grid=(m // tm,),
            in_specs=[pl.BlockSpec((tm, k), lambda i: (i, 0)),
                      pl.BlockSpec((k, n), lambda i: (0, 0))],
            out_specs=[pl.BlockSpec((tm, n), lambda i: (i, 0)),
                       pl.BlockSpec((8, n), lambda i: (0, 0))],   # resident accumulator
        ),
        # stats accumulate across the row axis -> reduction axis must be "arbitrary"
        compiler_params=pltpu.CompilerParams(dimension_semantics=("arbitrary",)),
    )(a, b)


def pallas_bn_relu(y, sb):
    m, c = y.shape
    tr = _row_tile(m)
    return pl.pallas_call(
        _bn_relu_kernel,
        out_shape=jax.ShapeDtypeStruct((m, c), jnp.float32),
        grid_spec=pltpu.PrefetchScalarGridSpec(
            num_scalar_prefetch=0,
            grid=(m // tr,),
            in_specs=[pl.BlockSpec((tr, c), lambda i: (i, 0)),
                      pl.BlockSpec((8, c), lambda i: (0, 0))],
            out_specs=pl.BlockSpec((tr, c), lambda i: (i, 0)),
        ),
        compiler_params=pltpu.CompilerParams(dimension_semantics=("parallel",)),
    )(y, sb)


def pallas_bn_add_bn_relu(y, y_res, sb):
    m, c = y.shape
    tr = _row_tile(m)
    return pl.pallas_call(
        _bn_add_bn_relu_kernel,
        out_shape=jax.ShapeDtypeStruct((m, c), jnp.float32),
        grid_spec=pltpu.PrefetchScalarGridSpec(
            num_scalar_prefetch=0,
            grid=(m // tr,),
            in_specs=[pl.BlockSpec((tr, c), lambda i: (i, 0)),
                      pl.BlockSpec((tr, c), lambda i: (i, 0)),
                      pl.BlockSpec((8, c), lambda i: (0, 0))],
            out_specs=pl.BlockSpec((tr, c), lambda i: (i, 0)),
        ),
        compiler_params=pltpu.CompilerParams(dimension_semantics=("parallel",)),
    )(y, y_res, sb)


# ------------------------------ glue (im2col, padding) ------------------------------

def _pad2d(x, rows, cols):
    return jnp.pad(x, ((0, rows - x.shape[0]), (0, cols - x.shape[1])))


def _pad1d(v, n):
    return jnp.pad(v, (0, n - v.shape[0]))


def _round_up(x, m):
    return ((x + m - 1) // m) * m


def conv_im2col_rows(x_nhwc, w_oihw, k, stride, pad):
    """Lower a conv to (patches, weight-matrix). Patch feature order = (kh, kw, cin)."""
    n, h, wd, cin = x_nhwc.shape
    cout = w_oihw.shape[0]
    xp = jnp.pad(x_nhwc, ((0, 0), (pad, pad), (pad, pad), (0, 0)))
    ho = (h + 2 * pad - k) // stride + 1
    wo = (wd + 2 * pad - k) // stride + 1
    cols = []
    for i in range(k):
        for j in range(k):
            cols.append(xp[:, i:i + stride * ho:stride, j:j + stride * wo:stride, :])
    patches = jnp.concatenate(cols, axis=-1).reshape(n * ho * wo, k * k * cin)
    wm = jnp.transpose(w_oihw, (2, 3, 1, 0)).reshape(k * k * cin, cout)
    return patches, wm, ho, wo


# ------------------------------ CNNBlock forward ------------------------------

def cnn_block_forward(x_nchw, params, downsample):
    stride = 2 if downsample else 1
    x = jnp.transpose(x_nchw, (0, 2, 3, 1)).astype(jnp.float32)   # NHWC internally
    n = x.shape[0]
    cout = params["w1"].shape[0]
    c_pad = _round_up(cout, LANE)

    def conv_stats(x_nhwc, w, k, s, p):
        patches, wm, ho, wo = conv_im2col_rows(x_nhwc, w, k, s, p)
        m, kk = patches.shape
        m_pad = _round_up(m, 128)
        k_pad = _round_up(kk, LANE)
        # bf16 MXU inputs, f32 accumulation (padded rows/channels are zero).
        a = _pad2d(patches, m_pad, k_pad).astype(jnp.bfloat16)
        b = _pad2d(wm, k_pad, c_pad).astype(jnp.bfloat16)
        y, stats = pallas_conv_matmul_stats(a, b)
        return y, stats, m, ho, wo

    def scale_shift(stats, m, gamma, beta):
        # Padded rows contribute 0 to sums -> exact batch stats with divisor m.
        mean = stats[0] / m
        var = jnp.maximum(stats[1] / m - mean * mean, 0.0)   # biased (training-mode) var
        g = _pad1d(gamma, c_pad)
        bt = _pad1d(beta, c_pad)
        scale = g * jax.lax.rsqrt(var + EPS)
        shift = bt - mean * scale
        return scale, shift

    # residual branch: 1x1 conv (stride). Its BN is folded into conv2's apply pass.
    yr, sr, mr, _, _ = conv_stats(x, params["wr"], 1, stride, 0)
    scale_r, shift_r = scale_shift(sr, mr, params["gr"], params["br"])

    # conv1 (3x3, stride) -> BN -> ReLU
    y1, s1, m1, ho1, wo1 = conv_stats(x, params["w1"], 3, stride, 1)
    scale1, shift1 = scale_shift(s1, m1, params["g1"], params["b1"])
    sb1 = jnp.zeros((8, c_pad), jnp.float32).at[0].set(scale1).at[1].set(shift1)
    a1 = pallas_bn_relu(y1, sb1)
    a1_nhwc = a1[:m1, :cout].reshape(n, ho1, wo1, cout)

    # conv2 (3x3, stride 1) -> BN -> + BN(residual) -> ReLU   (all fused in one apply)
    y2, s2, m2, ho2, wo2 = conv_stats(a1_nhwc, params["w2"], 3, 1, 1)
    scale2, shift2 = scale_shift(s2, m2, params["g2"], params["b2"])
    sb2 = (jnp.zeros((8, c_pad), jnp.float32)
           .at[0].set(scale2).at[1].set(shift2)
           .at[2].set(scale_r).at[3].set(shift_r))
    out_rows = pallas_bn_add_bn_relu(y2, yr, sb2)   # yr has identical (m_pad, c_pad)

    out = out_rows[:m2, :cout].reshape(n, ho2, wo2, cout)
    return jnp.transpose(out, (0, 3, 1, 2))          # back to NCHW


# ------------------------------ pure-JAX reference ------------------------------

def ref_forward(x, params, downsample, conv_dtype=jnp.float32):
    stride = 2 if downsample else 1

    def conv(x, w, s, p):
        return jax.lax.conv_general_dilated(
            x.astype(conv_dtype), w.astype(conv_dtype), (s, s), [(p, p), (p, p)],
            dimension_numbers=("NCHW", "OIHW", "NCHW"),
            preferred_element_type=jnp.float32)

    def bn(y, g, b):
        mean = jnp.mean(y, axis=(0, 2, 3), keepdims=True)
        var = jnp.mean((y - mean) ** 2, axis=(0, 2, 3), keepdims=True)
        return g[None, :, None, None] * (y - mean) / jnp.sqrt(var + EPS) + b[None, :, None, None]

    residual = bn(conv(x, params["wr"], stride, 0), params["gr"], params["br"])
    out = jnp.maximum(bn(conv(x, params["w1"], stride, 1), params["g1"], params["b1"]), 0.0)
    out = bn(conv(out, params["w2"], 1, 1), params["g2"], params["b2"])
    return jnp.maximum(out + residual, 0.0)


# ------------------------------ main ------------------------------

if __name__ == "__main__":
    in_channels, out_channels, downsample = 4, 8, True

    key = jax.random.PRNGKey(0)
    ks = jax.random.split(key, 8)
    x = jax.random.normal(ks[0], (2, in_channels, 16, 16), jnp.float32)

    params = dict(
        w1=0.2 * jax.random.normal(ks[1], (out_channels, in_channels, 3, 3), jnp.float32),
        w2=0.2 * jax.random.normal(ks[2], (out_channels, out_channels, 3, 3), jnp.float32),
        wr=0.2 * jax.random.normal(ks[3], (out_channels, in_channels, 1, 1), jnp.float32),
        g1=1.0 + 0.1 * jax.random.normal(ks[4], (out_channels,), jnp.float32),
        b1=0.1 * jax.random.normal(ks[5], (out_channels,), jnp.float32),
        g2=1.0 + 0.1 * jax.random.normal(ks[6], (out_channels,), jnp.float32),
        b2=0.1 * jax.random.normal(ks[7], (out_channels,), jnp.float32),
        gr=jnp.ones((out_channels,), jnp.float32),   # nn.BatchNorm2d default init
        br=jnp.zeros((out_channels,), jnp.float32),
    )

    out = jax.block_until_ready(cnn_block_forward(x, params, downsample))

    # Reference A: same module semantics with bf16 conv inputs + f32 accumulation
    # (matches the kernel's MXU numerics) -> tight tolerance.
    ref_bf16 = jax.block_until_ready(ref_forward(x, params, downsample, jnp.bfloat16))
    # Reference B: exact f32 module semantics -> loose tolerance (bf16 MXU inputs
    # perturb the conv outputs by ~1e-2 after BN normalization).
    ref_f32 = jax.block_until_ready(ref_forward(x, params, downsample, jnp.float32))

    assert out.shape == ref_f32.shape == (2, out_channels, 8, 8), (out.shape, ref_f32.shape)
    err_bf16 = float(jnp.max(jnp.abs(out - ref_bf16)))
    err_f32 = float(jnp.max(jnp.abs(out - ref_f32)))
    assert jnp.allclose(out, ref_bf16, atol=2e-3, rtol=2e-3), f"bf16-ref max_err={err_bf16}"
    assert jnp.allclose(out, ref_f32, atol=5e-2, rtol=5e-2), f"f32-ref max_err={err_f32}"

    print("KERNEL_OK")
</pallas_src>

<mosaic_0001>
module attributes {stable_mosaic.version = 11 : i64} {
  func.func @_matmul_stats_kernel(%arg0: i32, %arg1: memref<128x128xbf16, #tpu.memory_space<vmem>>, %arg2: memref<128x128xbf16, #tpu.memory_space<vmem>>, %arg3: memref<128x128xf32, #tpu.memory_space<vmem>>, %arg4: memref<8x128xf32, #tpu.memory_space<vmem>>) attributes {dimension_semantics = [#tpu.dimension_semantics<arbitrary>], iteration_bounds = array<i64: 1>, scalar_prefetch = 0 : i64, scratch_operands = 0 : i64, tpu.core_type = #tpu.core_type<tc>, window_params = [{transform_indices = @transform_0, window_bounds = array<i64: 128, 128>}, {pipeline_mode = #tpu.pipeline_mode<synchronous>, transform_indices = @transform_1, window_bounds = array<i64: 128, 128>}, {transform_indices = @transform_2, window_bounds = array<i64: 128, 128>}, {pipeline_mode = #tpu.pipeline_mode<synchronous>, transform_indices = @transform_3, window_bounds = array<i64: 8, 128>}]} {
    %c0_i32 = arith.constant 0 : i32
    %0 = arith.cmpi eq, %arg0, %c0_i32 : i32
    %1 = arith.extui %0 : i1 to i32
    %c0_i32_0 = arith.constant 0 : i32
    %2 = arith.cmpi ne, %1, %c0_i32_0 : i32
    scf.if %2 {
      %cst_15 = arith.constant 0.000000e+00 : f32
      %18 = vector.broadcast %cst_15 : f32 to vector<8x128xf32>
      %c0_16 = arith.constant 0 : index
      %c0_17 = arith.constant 0 : index
      %19 = vector.load %arg4[%c0_16, %c0_17] : memref<8x128xf32, #tpu.memory_space<vmem>>, vector<8x128xf32>
      tpu.vector_store %arg4[%c0_16, %c0_17], %18 {strides = array<i32>} : memref<8x128xf32, #tpu.memory_space<vmem>>, vector<8x128xf32>,
    } else {
    }
    %c0 = arith.constant 0 : index
    %c0_1 = arith.constant 0 : index
    %3 = vector.load %arg1[%c0, %c0_1] : memref<128x128xbf16, #tpu.memory_space<vmem>>, vector<128x128xbf16>
    %c0_2 = arith.constant 0 : index
    %c0_3 = arith.constant 0 : index
    %4 = vector.load %arg2[%c0_2, %c0_3] : memref<128x128xbf16, #tpu.memory_space<vmem>>, vector<128x128xbf16>
    %cst = arith.constant dense<0.000000e+00> : vector<128x128xf32>
    %5 = tpu.matmul %3, %4, %cst {dimension_numbers = #tpu.dot_dimension_numbers<[1], [0], [0], [1], [0, 0, 1, 1], [], []>} : vector<128x128xbf16>, vector<128x128xbf16>, vector<128x128xf32> -> vector<128x128xf32>
    %c0_4 = arith.constant 0 : index
    %c0_5 = arith.constant 0 : index
    %6 = vector.load %arg3[%c0_4, %c0_5] : memref<128x128xf32, #tpu.memory_space<vmem>>, vector<128x128xf32>
    tpu.vector_store %arg3[%c0_4, %c0_5], %5 {strides = array<i32>} : memref<128x128xf32, #tpu.memory_space<vmem>>, vector<128x128xf32>,
    %c0_6 = arith.constant 0 : index
    %c0_7 = arith.constant 0 : index
    %7 = vector.load %arg4[%c0_6, %c0_7] : memref<8x128xf32, #tpu.memory_space<vmem>>, vector<1x128xf32>
    %cst_8 = arith.constant dense<0.000000e+00> : vector<128xf32>
    %8 = vector.multi_reduction <add>, %5, %cst_8 [0] : vector<128x128xf32> to vector<128xf32>
    %9 = vector.shape_cast %8 : vector<128xf32> to vector<1x128xf32>
    %10 = arith.addf %7, %9 : vector<1x128xf32>
    %c0_9 = arith.constant 0 : index
    %c0_10 = arith.constant 0 : index
    %11 = vector.load %arg4[%c0_9, %c0_10] : memref<8x128xf32, #tpu.memory_space<vmem>>, vector<1x128xf32>
    tpu.vector_store %arg4[%c0_9, %c0_10], %10 {strides = array<i32>} : memref<8x128xf32, #tpu.memory_space<vmem>>, vector<1x128xf32>,
    %c1 = arith.constant 1 : index
    %c0_11 = arith.constant 0 : index
    %12 = vector.load %arg4[%c1, %c0_11] : memref<8x128xf32, #tpu.memory_space<vmem>>, vector<1x128xf32>
    %13 = arith.mulf %5, %5 : vector<128x128xf32>
    %cst_12 = arith.constant dense<0.000000e+00> : vector<128xf32>
    %14 = vector.multi_reduction <add>, %13, %cst_12 [0] : vector<128x128xf32> to vector<128xf32>
    %15 = vector.shape_cast %14 : vector<128xf32> to vector<1x128xf32>
    %16 = arith.addf %12, %15 : vector<1x128xf32>
    %c1_13 = arith.constant 1 : index
    %c0_14 = arith.constant 0 : index
    %17 = vector.load %arg4[%c1_13, %c0_14] : memref<8x128xf32, #tpu.memory_space<vmem>>, vector<1x128xf32>
    tpu.vector_store %arg4[%c1_13, %c0_14], %16 {strides = array<i32>} : memref<8x128xf32, #tpu.memory_space<vmem>>, vector<1x128xf32>,
    return
  }
  func.func @transform_0(%arg0: i32) -> (i32, i32) {
    %c0_i32 = arith.constant 0 : i32
    %c0_i32_0 = arith.constant 0 : i32
    return %arg0, %c0_i32 : i32, i32
  }
  func.func @transform_1(%arg0: i32) -> (i32, i32) {
    %c0_i32 = arith.constant 0 : i32
    %c0_i32_0 = arith.constant 0 : i32
    %c0_i32_1 = arith.constant 0 : i32
    return %c0_i32, %c0_i32_0 : i32, i32
  }
  func.func @transform_2(%arg0: i32) -> (i32, i32) {
    %c0_i32 = arith.constant 0 : i32
    %c0_i32_0 = arith.constant 0 : i32
    return %arg0, %c0_i32 : i32, i32
  }
  func.func @transform_3(%arg0: i32) -> (i32, i32) {
    %c0_i32 = arith.constant 0 : i32
    %c0_i32_0 = arith.constant 0 : i32
    %c0_i32_1 = arith.constant 0 : i32
    return %c0_i32, %c0_i32_0 : i32, i32
  }
}

</mosaic_0001>

<llo_original>
// kernel: tpu_custom_call.1
$region0: #{tpu_custom_call.1}
  #allocation0 [shape = 'u32[]', space=smem, size = 0x4, offset = 0x4, fixed_abs, tag = 'smem constant byte address 0x4 - core index']
  #allocation1 [shape = 'u32[72,128]{1,0:T(1,128)}', space=vmem, size = 0x9000, scoped, tag = 'internal scratch']
  %s0 = inlined_call_operand.hbm [shape: bf16[128,128], index: 0, kind: input, shape index: {}]
  %s1 = inlined_call_operand.hbm [shape: bf16[128,128], index: 1, kind: input, shape index: {}]
  %s2 = inlined_call_operand.hbm [shape: f32[128,128], index: 2, kind: output, shape index: {0}]
  %s3 = inlined_call_operand.hbm [shape: f32[8,128], index: 3, kind: output, shape index: {1}]
  %4 = xla_tuple %s2, %s3
  %s5 = sld [smem:[#allocation0]]
  $region38: #{tpu_custom_call.1} parent=0
    _
  %s7 = ssub.s32 1, %s5
  %s8 = scalar_select 0, %s7, %s5
  $region1: #{tpu_custom_call.1} parent=0
    #allocation2 [shape = 'u8[32768]{0}', space=vmem, size = 0x8000, scoped, tag = 'input window, operand 0, single buffered']
    #allocation3 [shape = 's32[1]{0}', space=sflag, size = 0x4, scoped, tag = 'scoped memory for tpu_custom_call.1']
    #allocation4 [shape = 's32[1]{0}', space=sflag, size = 0x4, scoped, tag = 'scoped memory for tpu_custom_call.1']
    #allocation5 [shape = 'u8[32768]{0}', space=vmem, size = 0x8000, scoped, tag = 'input window, operand 1, single buffered']
    #allocation6 [shape = 's32[1]{0}', space=sflag, size = 0x4, scoped, tag = 'scoped memory for tpu_custom_call.1']
    #allocation7 [shape = 'u8[65536]{0}', space=vmem, size = 0x10000, scoped, tag = 'output window, operand 0, single buffered']
    #allocation8 [shape = 'u8[4096]{0}', space=vmem, size = 0x1000, scoped, tag = 'output window, operand 1, single buffered']
    #allocation9 [shape = 's32[1]{0}', space=sflag, size = 0x4, scoped, tag = 'scoped memory for tpu_custom_call.1']
    %9 = vsyncpa [#allocation3], 0
    %10 = vsyncpa [#allocation6], 0
    %11 = vsyncpa [#allocation4], 0
    %12 = vsyncpa [#allocation9], 0
    // Predicated region
    $region2: #{tpu_custom_call.1} parent=1 // pred_check
      _
    $region3: #{tpu_custom_call.1} parent=1 // pred_check_branch
      %14 = sbr.rel (0) target = $region5
    $region4: #{tpu_custom_call.1} parent=1 // pred_region
      %16 = vsyncadd [#allocation3], 0
      %s17 = sshll.u32 %s0, 4
      %s18 = int_to_ptr.hbm [resolvable:$true] %s17
      %s19 = sshll.u32 [#allocation2], 4
      %s20 = int_to_ptr.vmem [resolvable:$true] %s19
      %25 = dma.hbm_to_vmem [thread:$0]  %s18, 1024, %s20, [#allocation3], 64, 64, 4
    $region5: #{tpu_custom_call.1} parent=1 // pred_fallthru
      _
    // Predicated region
    $region6: #{tpu_custom_call.1} parent=1 // pred_check
      _
    $region7: #{tpu_custom_call.1} parent=1 // pred_check_branch
      %27 = sbr.rel (0) target = $region9
    $region8: #{tpu_custom_call.1} parent=1 // pred_region
      %29 = vsyncadd [#allocation6], 0
      %s30 = sshll.u32 %s1, 4
      %s31 = int_to_ptr.hbm [resolvable:$true] %s30
      %s32 = sshll.u32 [#allocation5], 4
      %s33 = int_to_ptr.vmem [resolvable:$true] %s32
      %38 = dma.hbm_to_vmem [thread:$0]  %s31, 1024, %s33, [#allocation6], 64, 64, 4
    $region9: #{tpu_custom_call.1} parent=1 // pred_fallthru
      _
    // Predicated region
    $region10: #{tpu_custom_call.1} parent=1 // pred_check
      _
    $region11: #{tpu_custom_call.1} parent=1 // pred_check_branch
      %40 = sbr.rel (0) target = $region13
    $region12: #{tpu_custom_call.1} parent=1 // pred_region
      %42 = dma.done [#allocation3], 1024
    $region13: #{tpu_custom_call.1} parent=1 // pred_fallthru
      _
    // Predicated region
    $region14: #{tpu_custom_call.1} parent=1 // pred_check
      _
    $region15: #{tpu_custom_call.1} parent=1 // pred_check_branch
      %44 = sbr.rel (0) target = $region17
    $region16: #{tpu_custom_call.1} parent=1 // pred_region
      %46 = dma.done [#allocation6], 1024
    $region17: #{tpu_custom_call.1} parent=1 // pred_fallthru
      _
    %p47 = scmp.eq.s32.totalorder 0, 0
    // Predicated region
    $region18: #{tpu_custom_call.1} parent=1 // pred_check
      %p48 = pneg %p47
    $region19: #{tpu_custom_call.1} parent=1 // pred_check_branch
      %50 = sbr.rel (%p48) target = $region21
    $region20: #{tpu_custom_call.1} parent=1 // pred_region
      %51 = vst [vmem:[#allocation8] sm:$0xff] 0.0
    $region21: #{tpu_custom_call.1} parent=1 // pred_fallthru
      _
    %v52 = vld [vmem:[#allocation2] sm:$0xf]
    %v53 = vld [vmem:[#allocation2 + $0x4] sm:$0xf]
    %v54 = vld [vmem:[#allocation2 + $0x8] sm:$0xf]
    %v55 = vld [vmem:[#allocation2 + $0xc] sm:$0xf]
    %v56 = vld [vmem:[#allocation2 + $0x10] sm:$0xf]
    %v57 = vld [vmem:[#allocation2 + $0x14] sm:$0xf]
    %v58 = vld [vmem:[#allocation2 + $0x18] sm:$0xf]
    %v59 = vld [vmem:[#allocation2 + $0x1c] sm:$0xf]
    %v60 = vld [vmem:[#allocation2 + $0x20] sm:$0xf]
    %v61 = vld [vmem:[#allocation2 + $0x24] sm:$0xf]
    %v62 = vld [vmem:[#allocation2 + $0x28] sm:$0xf]
    %v63 = vld [vmem:[#allocation2 + $0x2c] sm:$0xf]
    %v64 = vld [vmem:[#allocation2 + $0x30] sm:$0xf]
    %v65 = vld [vmem:[#allocation2 + $0x34] sm:$0xf]
    %v66 = vld [vmem:[#allocation2 + $0x38] sm:$0xf]
    %v67 = vld [vmem:[#allocation2 + $0x3c] sm:$0xf]
    %v68 = vld [vmem:[#allocation5] sm:$0xf]
    %v69 = vld [vmem:[#allocation5 + $0x4] sm:$0xf]
    %v70 = vld [vmem:[#allocation5 + $0x8] sm:$0xf]
    %v71 = vld [vmem:[#allocation5 + $0xc] sm:$0xf]
    %v72 = vld [vmem:[#allocation5 + $0x10] sm:$0xf]
    %v73 = vld [vmem:[#allocation5 + $0x14] sm:$0xf]
    %v74 = vld [vmem:[#allocation5 + $0x18] sm:$0xf]
    %v75 = vld [vmem:[#allocation5 + $0x1c] sm:$0xf]
    %v76 = vld [vmem:[#allocation5 + $0x20] sm:$0xf]
    %v77 = vld [vmem:[#allocation5 + $0x24] sm:$0xf]
    %v78 = vld [vmem:[#allocation5 + $0x28] sm:$0xf]
    %v79 = vld [vmem:[#allocation5 + $0x2c] sm:$0xf]
    %v80 = vld [vmem:[#allocation5 + $0x30] sm:$0xf]
    %v81 = vld [vmem:[#allocation5 + $0x34] sm:$0xf]
    %v82 = vld [vmem:[#allocation5 + $0x38] sm:$0xf]
    %v83 = vld [vmem:[#allocation5 + $0x3c] sm:$0xf]
    %v100 = vunpack.c.l.b16 %v52
    %v101 = vunpack.c.l.b16 %v53
    %v102 = vunpack.c.l.b16 %v54
    %v103 = vunpack.c.l.b16 %v55
    %v104 = vunpack.c.l.b16 %v56
    %v105 = vunpack.c.l.b16 %v57
    %v106 = vunpack.c.l.b16 %v58
    %v107 = vunpack.c.l.b16 %v59
    %v108 = vunpack.c.l.b16 %v60
    %v109 = vunpack.c.l.b16 %v61
    %v110 = vunpack.c.l.b16 %v62
    %v111 = vunpack.c.l.b16 %v63
    %v112 = vunpack.c.l.b16 %v64
    %v113 = vunpack.c.l.b16 %v65
    %v114 = vunpack.c.l.b16 %v66
    %v115 = vunpack.c.l.b16 %v67
    %v116 = vpack.c.b16 %v101, %v100
    %v117 = vpack.c.b16 %v103, %v102
    %v118 = vpack.c.b16 %v105, %v104
    %v119 = vpack.c.b16 %v107, %v106
    %v120 = vpack.c.b16 %v109, %v108
    %v121 = vpack.c.b16 %v111, %v110
    %v122 = vpack.c.b16 %v113, %v112
    %v123 = vpack.c.b16 %v115, %v114
    %v148 = vunpack.c.l.b16 %v68
    %v149 = vunpack.c.l.b16 %v69
    %v150 = vunpack.c.l.b16 %v70
    %v151 = vunpack.c.l.b16 %v71
    %v152 = vunpack.c.l.b16 %v72
    %v153 = vunpack.c.l.b16 %v73
    %v154 = vunpack.c.l.b16 %v74
    %v155 = vunpack.c.l.b16 %v75
    %v156 = vunpack.c.l.b16 %v76
    %v157 = vunpack.c.l.b16 %v77
    %v158 = vunpack.c.l.b16 %v78
    %v159 = vunpack.c.l.b16 %v79
    %v160 = vunpack.c.l.b16 %v80
    %v161 = vunpack.c.l.b16 %v81
    %v162 = vunpack.c.l.b16 %v82
    %v163 = vunpack.c.l.b16 %v83
    %v164 = vpack.c.b16 %v149, %v148
    %v165 = vpack.c.b16 %v151, %v150
    %v166 = vpack.c.b16 %v153, %v152
    %v167 = vpack.c.b16 %v155, %v154
    %v168 = vpack.c.b16 %v157, %v156
    %v169 = vpack.c.b16 %v159, %v158
    %v170 = vpack.c.b16 %v161, %v160
    %v171 = vpack.c.b16 %v163, %v162
    %180 = vmatpush.bf16.msra.mxu0 %v171
    %181 = vmatpush.bf16.msra.mxu0 %v170
    %182 = vmatpush.bf16.msra.mxu0 %v169
    %183 = vmatpush.bf16.msra.mxu0 %v168
    %184 = vmatpush.bf16.msra.mxu0 %v167
    %185 = vmatpush.bf16.msra.mxu0 %v166
    %186 = vmatpush.bf16.msra.mxu0 %v165
    %187 = vmatpush.bf16.msra.mxu0 %v164
    %188 = vmatmul.bf16.gmra.mxu0 %v116
    %v189 = vpop.f32.mrf.mxu0
    %v190 = vadd.f32 0.0, %v189
    %v191 = vpop.f32.mrf.mxu0
    %v192 = vadd.f32 0.0, %v191
    %193 = vmatmul.bf16.gmra.mxu0 %v117
    %v194 = vpop.f32.mrf.mxu0
    %v195 = vadd.f32 0.0, %v194
    %v196 = vpop.f32.mrf.mxu0
    %v197 = vadd.f32 0.0, %v196
    %198 = vmatmul.bf16.gmra.mxu0 %v118
    %v199 = vpop.f32.mrf.mxu0
    %v200 = vadd.f32 0.0, %v199
    %v201 = vpop.f32.mrf.mxu0
    %v202 = vadd.f32 0.0, %v201
    %203 = vmatmul.bf16.gmra.mxu0 %v119
    %v204 = vpop.f32.mrf.mxu0
    %v205 = vadd.f32 0.0, %v204
    %v206 = vpop.f32.mrf.mxu0
    %v207 = vadd.f32 0.0, %v206
    %208 = vmatmul.bf16.gmra.mxu0 %v120
    %v209 = vpop.f32.mrf.mxu0
    %v210 = vadd.f32 0.0, %v209
    %v211 = vpop.f32.mrf.mxu0
    %v212 = vadd.f32 0.0, %v211
    %213 = vmatmul.bf16.gmra.mxu0 %v121
    %v214 = vpop.f32.mrf.mxu0
    %v215 = vadd.f32 0.0, %v214
    %v216 = vpop.f32.mrf.mxu0
    %v217 = vadd.f32 0.0, %v216
    %218 = vmatmul.bf16.gmra.mxu0 %v122
    %v219 = vpop.f32.mrf.mxu0
    %v220 = vadd.f32 0.0, %v219
    %v221 = vpop.f32.mrf.mxu0
    %v222 = vadd.f32 0.0, %v221
    %223 = vmatmul.bf16.gmra.mxu0 %v123
    %v224 = vpop.f32.mrf.mxu0
    %v225 = vadd.f32 0.0, %v224
    %v226 = vpop.f32.mrf.mxu0
    %v227 = vadd.f32 0.0, %v226
    %228 = vdwg.mxu0
    %229 = vst [vmem:[#allocation7] sm:$0xff] %v190
    %230 = vst [vmem:[#allocation7 + $0x8] sm:$0xff] %v192
    %231 = vst [vmem:[#allocation7 + $0x10] sm:$0xff] %v195
    %232 = vst [vmem:[#allocation7 + $0x18] sm:$0xff] %v197
    %233 = vst [vmem:[#allocation7 + $0x20] sm:$0xff] %v200
    %234 = vst [vmem:[#allocation7 + $0x28] sm:$0xff] %v202
    %235 = vst [vmem:[#allocation7 + $0x30] sm:$0xff] %v205
    %236 = vst [vmem:[#allocation7 + $0x38] sm:$0xff] %v207
    %237 = vst [vmem:[#allocation7 + $0x40] sm:$0xff] %v210
    %238 = vst [vmem:[#allocation7 + $0x48] sm:$0xff] %v212
    %239 = vst [vmem:[#allocation7 + $0x50] sm:$0xff] %v215
    %240 = vst [vmem:[#allocation7 + $0x58] sm:$0xff] %v217
    %241 = vst [vmem:[#allocation7 + $0x60] sm:$0xff] %v220
    %242 = vst [vmem:[#allocation7 + $0x68] sm:$0xff] %v222
    %243 = vst [vmem:[#allocation7 + $0x70] sm:$0xff] %v225
    %244 = vst [vmem:[#allocation7 + $0x78] sm:$0xff] %v227
    %v245 = vld [vmem:[#allocation8] sm:$0x1]
    %v246 = vadd.f32 %v190, %v192
    %v247 = vadd.f32 %v246, %v195
    %v248 = vadd.f32 %v247, %v197
    %v249 = vadd.f32 %v248, %v200
    %v250 = vadd.f32 %v249, %v202
    %v251 = vadd.f32 %v250, %v205
    %v252 = vadd.f32 %v251, %v207
    %v253 = vadd.f32 %v252, %v210
    %v254 = vadd.f32 %v253, %v212
    %v255 = vadd.f32 %v254, %v215
    %v256 = vadd.f32 %v255, %v217
    %v257 = vadd.f32 %v256, %v220
    %v258 = vadd.f32 %v257, %v222
    %v259 = vadd.f32 %v258, %v225
    %v260 = vadd.f32 %v259, %v227
    %v261 = vrot.slane %v260, 4
    %v262 = vadd.f32 %v260, %v261
    %v263 = vrot.slane %v262, 2
    %v264 = vadd.f32 %v262, %v263
    %v265 = vrot.slane %v264, 1
    %v266 = vadd.f32 %v264, %v265
    %v267 = vadd.f32 %v245, %v266
    %268 = vst [vmem:[#allocation8] sm:$0x1] %v267
    %v269 = vld [vmem:[#allocation8 + $0x1] sm:$0x1]
    %v270 = vmul.f32 %v190, %v190
    %v271 = vmul.f32 %v192, %v192
    %v272 = vmul.f32 %v195, %v195
    %v273 = vmul.f32 %v197, %v197
    %v274 = vmul.f32 %v200, %v200
    %v275 = vmul.f32 %v202, %v202
    %v276 = vmul.f32 %v205, %v205
    %v277 = vmul.f32 %v207, %v207
    %v278 = vmul.f32 %v210, %v210
    %v279 = vmul.f32 %v212, %v212
    %v280 = vmul.f32 %v215, %v215
    %v281 = vmul.f32 %v217, %v217
    %v282 = vmul.f32 %v220, %v220
    %v283 = vmul.f32 %v222, %v222
    %v284 = vmul.f32 %v225, %v225
    %v285 = vmul.f32 %v227, %v227
    %v286 = vadd.f32 %v270, %v271
    %v287 = vadd.f32 %v286, %v272
    %v288 = vadd.f32 %v287, %v273
    %v289 = vadd.f32 %v288, %v274
    %v290 = vadd.f32 %v289, %v275
    %v291 = vadd.f32 %v290, %v276
    %v292 = vadd.f32 %v291, %v277
    %v293 = vadd.f32 %v292, %v278
    %v294 = vadd.f32 %v293, %v279
    %v295 = vadd.f32 %v294, %v280
    %v296 = vadd.f32 %v295, %v281
    %v297 = vadd.f32 %v296, %v282
    %v298 = vadd.f32 %v297, %v283
    %v299 = vadd.f32 %v298, %v284
    %v300 = vadd.f32 %v299, %v285
    %v301 = vrot.slane %v300, 4
    %v302 = vadd.f32 %v300, %v301
    %v303 = vrot.slane %v302, 2
    %v304 = vadd.f32 %v302, %v303
    %v305 = vrot.slane %v304, 1
    %v306 = vadd.f32 %v304, %v305
    %v307 = vadd.f32 %v269, %v306
    %308 = vst [vmem:[#allocation8 + $0x1] sm:$0x1] %v307
    // Predicated region
    $region22: #{tpu_custom_call.1} parent=1 // pred_check
      _
    $region23: #{tpu_custom_call.1} parent=1 // pred_check_branch
      %310 = sbr.rel (0) target = $region25
    $region24: #{tpu_custom_call.1} parent=1 // pred_region
      %312 = vsyncadd [#allocation4], 0
      %s313 = sshll.u32 [#allocation7], 4
      %s314 = int_to_ptr.vmem [resolvable:$true] %s313
      %s315 = sshll.u32 %s2, 4
      %s316 = int_to_ptr.hbm [resolvable:$true] %s315
      %321 = dma.vmem_to_hbm [thread:$0]  %s314, 2048, %s316, [#allocation4], 128, 128, 8
    $region25: #{tpu_custom_call.1} parent=1 // pred_fallthru
      _
    // Predicated region
    $region26: #{tpu_custom_call.1} parent=1 // pred_check
      _
    $region27: #{tpu_custom_call.1} parent=1 // pred_check_branch
      %323 = sbr.rel (0) target = $region29
    $region28: #{tpu_custom_call.1} parent=1 // pred_region
      %325 = vsyncadd [#allocation9], 0
      %s327 = sshll.u32 [#allocation8], 4
      %s328 = int_to_ptr.vmem [resolvable:$true] %s327
      %s329 = sshll.u32 %s3, 4
      %s330 = int_to_ptr.hbm [resolvable:$true] %s329
      %332 = dma.vmem_to_hbm [thread:$0]  %s328, 128, %s330, [#allocation9]
    $region29: #{tpu_custom_call.1} parent=1 // pred_fallthru
      _
    // Predicated region
    $region30: #{tpu_custom_call.1} parent=1 // pred_check
      _
    $region31: #{tpu_custom_call.1} parent=1 // pred_check_branch
      %334 = sbr.rel (0) target = $region33
    $region32: #{tpu_custom_call.1} parent=1 // pred_region
      %336 = dma.done [#allocation4], 2048
    $region33: #{tpu_custom_call.1} parent=1 // pred_fallthru
      _
    // Predicated region
    $region34: #{tpu_custom_call.1} parent=1 // pred_check
      _
    $region35: #{tpu_custom_call.1} parent=1 // pred_check_branch
      %338 = sbr.rel (0) target = $region37
    $region36: #{tpu_custom_call.1} parent=1 // pred_region
      %340 = dma.done [#allocation9], 128
    $region37: #{tpu_custom_call.1} parent=1 // pred_fallthru
      _
    %341 = vsyncpa [#allocation3], 1
    %342 = vsyncpa [#allocation6], 1
    %343 = vsyncpa [#allocation4], 1
    %344 = vsyncpa [#allocation9], 1

</llo_original>
